<compile_context>
chip_gen: v7x
topology: tpu7x:2x2x1
jax: 0.10.0
libtpu: 0.0.40
codegen_flags: <defaults>
</compile_context>

<pallas_src>
import math
import functools

import numpy as np
import jax
import jax.numpy as jnp
from jax import lax
from jax.experimental import pallas as pl
from jax.experimental.pallas import tpu as pltpu

NUM_STAGE = 2  # num_stage in STN.__init__


# ----------------------------------------------------------------------------
# Kernel 1: localization MLP  (w1 -> BN -> ReLU -> [Linear residual blocks] -> w2)
# BatchNorm1d is folded (eval mode) into per-feature (scale, shift) vectors.
# Dropout is identity in eval mode.
# ----------------------------------------------------------------------------
def _mlp_kernel(noise_ref, w1_ref, b1_ref, s1_ref, t1_ref,
                wst_ref, bst_ref, sst_ref, tst_ref,
                w2_ref, b2_ref, theta_ref):
    y = jnp.dot(noise_ref[...], w1_ref[...], preferred_element_type=jnp.float32)
    y = y + b1_ref[...]
    y = y * s1_ref[...] + t1_ref[...]
    y = jnp.maximum(y, 0.0)

    for st in range(NUM_STAGE):          # residual "Linear" blocks
        h = y
        for j in range(2):
            k = 2 * st + j
            h = jnp.dot(h, wst_ref[k], preferred_element_type=jnp.float32)
            h = h + bst_ref[k:k + 1, :]
            h = h * sst_ref[k:k + 1, :] + tst_ref[k:k + 1, :]
            h = jnp.maximum(h, 0.0)
        y = y + h

    theta_ref[...] = (jnp.dot(y, w2_ref[...], preferred_element_type=jnp.float32)
                      + b2_ref[...])


def localization(noise, params):
    (w1, b1, s1, t1, wst, bst, sst, tst, w2, b2) = params
    n = noise.shape[0]
    vmem = pl.BlockSpec(memory_space=pltpu.MemorySpace.VMEM)
    theta6 = pl.pallas_call(
        _mlp_kernel,
        out_shape=jax.ShapeDtypeStruct((n, 6), jnp.float32),
        in_specs=[vmem] * 11,
        out_specs=vmem,
    )(noise, w1, b1, s1, t1, wst, bst, sst, tst, w2, b2)
    return theta6                                            # (N, 6) flat: a,b,tx,c,d,ty


# ----------------------------------------------------------------------------
# Kernel 2: affine_grid + grid_sample (bilinear, zeros padding, align_corners=False)
# for the forward AND inverse theta of G batch elements per grid step.
#
# Separable, M-free formulation:
#   WxT[w,p] / WyT[h,p]: one-hot/fractional weights of input col w / row h for
#   output pixel p (out-of-range taps never match an iota row -> zeros padding).
#   stage 1 (MXU): t1(C*H, P) = img(C*H, W) @ WxT(W, P)
#   stage 2 (VPU): out(C, P)  = sum_h t1(C, H, P) * WyT(H, P)
# ----------------------------------------------------------------------------
def _affine_sample_kernel(theta_ref, img_ref, out_ref, *, C, H, W, G):
    P = H * W
    f32 = jnp.float32

    # Per-output-pixel base grid (align_corners=False); theta-independent -> hoisted.
    po = lax.broadcasted_iota(jnp.int32, (1, P), 1)          # flat output pixel index
    wo = (po % W).astype(f32)
    ho = (po // W).astype(f32)
    xn = (2.0 * wo + 1.0) / W - 1.0
    yn = (2.0 * ho + 1.0) / H - 1.0

    wrow = lax.broadcasted_iota(jnp.int32, (W, P), 0)        # input column index
    hrow = lax.broadcasted_iota(jnp.int32, (H, P), 0)        # input row index

    th = theta_ref[...]                                      # (G, 2, 6), tiny

    for g in range(G):
        img2d = img_ref[g].astype(f32)                       # (C*H, W), loaded once per g
        for s in range(2):                                   # s=0: theta, s=1: inv(theta)
            a = th[g, s:s + 1, 0:1]; b = th[g, s:s + 1, 1:2]; tx = th[g, s:s + 1, 2:3]
            c = th[g, s:s + 1, 3:4]; d = th[g, s:s + 1, 4:5]; ty = th[g, s:s + 1, 5:6]

            # F.affine_grid (align_corners=False)
            gx = a * xn + b * yn + tx                        # (1, P) normalized coords
            gy = c * xn + d * yn + ty
            # F.grid_sample unnormalize (align_corners=False)
            ix = ((gx + 1.0) * W - 1.0) * 0.5
            iy = ((gy + 1.0) * H - 1.0) * 0.5

            x0f = jnp.floor(ix); fx = ix - x0f; x0 = x0f.astype(jnp.int32)
            y0f = jnp.floor(iy); fy = iy - y0f; y0 = y0f.astype(jnp.int32)

            # Separable bilinear weights; OOB taps never match -> zeros padding.
            wxT = (jnp.where(wrow == x0, 1.0 - fx, 0.0)
                   + jnp.where(wrow == x0 + 1, fx, 0.0))     # (W, P)
            wyT = (jnp.where(hrow == y0, 1.0 - fy, 0.0)
                   + jnp.where(hrow == y0 + 1, fy, 0.0))     # (H, P)

            # Stage 1 (MXU): interpolate along x for every (channel, input-row).
            t1 = jnp.dot(img2d, wxT, preferred_element_type=f32)           # (C*H, P)
            # Stage 2 (VPU + sublane reduce): interpolate along y.
            res = jnp.sum(t1.reshape(C, H, P) * wyT[None, :, :], axis=1)   # (C, P)

            out_ref[s, g, :, :] = res.astype(out_ref.dtype)


def affine_sample_pair(x, theta_all, *, group=None):
    """x: (B, C, H, W), theta_all: (B, 2, 6) [fwd, inv] ->
    (2B, C, H, W) = [grid_sample(x, theta) ; grid_sample(x, theta_inv)]."""
    B, C, H, W = x.shape
    P = H * W
    G = group if group is not None else math.gcd(B, 8)       # G | B, G <= 8
    x2 = x.reshape(B, C * H, W)                              # free reshape in HBM

    out = pl.pallas_call(
        functools.partial(_affine_sample_kernel, C=C, H=H, W=W, G=G),
        out_shape=jax.ShapeDtypeStruct((2, B, C, P), x.dtype),
        grid_spec=pltpu.PrefetchScalarGridSpec(
            num_scalar_prefetch=0,
            grid=(B // G,),
            in_specs=[pl.BlockSpec((G, 2, 6), lambda n: (n, 0, 0)),
                      pl.BlockSpec((G, C * H, W), lambda n: (n, 0, 0))],
            out_specs=pl.BlockSpec((2, G, C, P), lambda n: (0, n, 0, 0))),
        compiler_params=pltpu.CompilerParams(
            dimension_semantics=("parallel",)),              # independent output blocks
    )(theta_all, x2)
    return out.reshape(2 * B, C, H, W)                       # [x_tf ; x_tf_inv]


# ----------------------------------------------------------------------------
# Glue (plain JAX, negligible work): closed-form inverse of [[theta],[0,0,1]].
# ----------------------------------------------------------------------------
def _inverse_theta6(theta6):
    a, b, tx, c, d, ty = (theta6[:, k] for k in range(6))
    det = a * d - b * c
    inv = jnp.stack([d, -b, b * ty - d * tx, -c, a, c * tx - a * ty], axis=-1)
    return inv / det[:, None]


def stn_forward(noise, x, label, params):
    theta6 = localization(noise, params)                            # (N, 6)
    theta_all = jnp.stack([theta6, _inverse_theta6(theta6)], 1)     # (N, 2, 6)
    x_comb = affine_sample_pair(x, theta_all)                       # (2N, C, H, W)
    label_comb = jnp.concatenate([label, label], axis=0)
    # TODO(synk): require_loss branch (MSE recon + diversity losses w/ torch.randn_like)
    # and require_grid output are not implemented.
    return x_comb, label_comb


# ----------------------------------------------------------------------------
# Deterministic parameter construction (shapes per STN.__init__; eval-mode BN).
# ----------------------------------------------------------------------------
def init_params(key, input_size, linear_size, num_stage, eps=1e-5):
    keys = iter(jax.random.split(key, 2 + 4 * num_stage))

    def lin(k, fan_in, shape):
        bound = 1.0 / math.sqrt(fan_in)
        return jax.random.uniform(k, shape, jnp.float32, -bound, bound)

    def bn_fold():
        gamma = jnp.ones((1, linear_size), jnp.float32)
        beta = jnp.zeros((1, linear_size), jnp.float32)
        rm = jnp.zeros((1, linear_size), jnp.float32)
        rv = jnp.ones((1, linear_size), jnp.float32)
        scale = gamma / jnp.sqrt(rv + eps)
        return scale, beta - rm * scale

    w1 = lin(next(keys), input_size, (input_size, linear_size))   # (in, out)
    b1 = lin(next(keys), input_size, (1, linear_size))
    s1, t1 = bn_fold()

    wst, bst, sst, tst = [], [], [], []
    for _ in range(2 * num_stage):
        wst.append(lin(next(keys), linear_size, (linear_size, linear_size)))
        bst.append(lin(next(keys), linear_size, (linear_size,)))
        s, t = bn_fold()
        sst.append(s[0]); tst.append(t[0])
    wst = jnp.stack(wst); bst = jnp.stack(bst)
    sst = jnp.stack(sst); tst = jnp.stack(tst)

    w2 = jnp.zeros((linear_size, 6), jnp.float32)                 # w2.weight.zero_()
    b2 = jnp.array([[1., 0., 0., 0., 1., 0.]], jnp.float32)       # identity bias
    return (w1, b1, s1, t1, wst, bst, sst, tst, w2, b2)


if __name__ == "__main__":
    N, C, H, W = 2, 4, 16, 16
    input_size, linear_size = 16, 32

    key = jax.random.PRNGKey(0)
    kn, kx, kp = jax.random.split(key, 3)
    noise = jax.random.normal(kn, (N, input_size), jnp.float32)
    x = jax.random.normal(kx, (N, C, H, W), jnp.float32)
    label = jnp.arange(N, dtype=jnp.int32)
    params = init_params(kp, input_size, linear_size, NUM_STAGE)

    x_comb, label_comb = stn_forward(noise, x, label, params)
    jax.block_until_ready((x_comb, label_comb))

    assert x_comb.shape == (2 * N, C, H, W)
    assert label_comb.shape == (2 * N,)
    assert bool(jnp.all(jnp.isfinite(x_comb)))
    # With w2 zero + identity bias (as in the torch __init__), theta is the identity
    # affine, so the sampler must (approximately) reproduce x for both halves
    # (default-precision MXU rounding only).
    np.testing.assert_allclose(np.asarray(x_comb[:N]), np.asarray(x), atol=2e-2)
    np.testing.assert_allclose(np.asarray(x_comb[N:]), np.asarray(x), atol=2e-2)
    print("KERNEL_OK")
</pallas_src>

<mosaic_0001>
module attributes {stable_mosaic.version = 11 : i64} {
  func.func @_mlp_kernel(%arg0: memref<2x16xf32, #tpu.memory_space<vmem>>, %arg1: memref<16x32xf32, #tpu.memory_space<vmem>>, %arg2: memref<1x32xf32, #tpu.memory_space<vmem>>, %arg3: memref<1x32xf32, #tpu.memory_space<vmem>>, %arg4: memref<1x32xf32, #tpu.memory_space<vmem>>, %arg5: memref<4x32x32xf32, #tpu.memory_space<vmem>>, %arg6: memref<4x32xf32, #tpu.memory_space<vmem>>, %arg7: memref<4x32xf32, #tpu.memory_space<vmem>>, %arg8: memref<4x32xf32, #tpu.memory_space<vmem>>, %arg9: memref<32x6xf32, #tpu.memory_space<vmem>>, %arg10: memref<1x6xf32, #tpu.memory_space<vmem>>, %arg11: memref<2x6xf32, #tpu.memory_space<vmem>>) attributes {dimension_semantics = [], scalar_prefetch = 0 : i64, scratch_operands = 0 : i64, tpu.core_type = #tpu.core_type<tc>} {
    %c0 = arith.constant 0 : index
    %c0_0 = arith.constant 0 : index
    %0 = vector.load %arg0[%c0, %c0_0] : memref<2x16xf32, #tpu.memory_space<vmem>>, vector<2x16xf32>
    %c0_1 = arith.constant 0 : index
    %c0_2 = arith.constant 0 : index
    %1 = vector.load %arg1[%c0_1, %c0_2] : memref<16x32xf32, #tpu.memory_space<vmem>>, vector<16x32xf32>
    %cst = arith.constant dense<0.000000e+00> : vector<2x32xf32>
    %2 = tpu.matmul %0, %1, %cst {dimension_numbers = #tpu.dot_dimension_numbers<[1], [0], [0], [1], [0, 0, 1, 1], [], []>} : vector<2x16xf32>, vector<16x32xf32>, vector<2x32xf32> -> vector<2x32xf32>
    %c0_3 = arith.constant 0 : index
    %c0_4 = arith.constant 0 : index
    %3 = vector.load %arg2[%c0_3, %c0_4] : memref<1x32xf32, #tpu.memory_space<vmem>>, vector<1x32xf32>
    %4 = vector.broadcast %3 : vector<1x32xf32> to vector<2x32xf32>
    %5 = arith.addf %2, %4 : vector<2x32xf32>
    %c0_5 = arith.constant 0 : index
    %c0_6 = arith.constant 0 : index
    %6 = vector.load %arg3[%c0_5, %c0_6] : memref<1x32xf32, #tpu.memory_space<vmem>>, vector<1x32xf32>
    %7 = vector.broadcast %6 : vector<1x32xf32> to vector<2x32xf32>
    %8 = arith.mulf %5, %7 : vector<2x32xf32>
    %c0_7 = arith.constant 0 : index
    %c0_8 = arith.constant 0 : index
    %9 = vector.load %arg4[%c0_7, %c0_8] : memref<1x32xf32, #tpu.memory_space<vmem>>, vector<1x32xf32>
    %10 = vector.broadcast %9 : vector<1x32xf32> to vector<2x32xf32>
    %11 = arith.addf %8, %10 : vector<2x32xf32>
    %cst_9 = arith.constant 0.000000e+00 : f32
    %12 = vector.broadcast %cst_9 : f32 to vector<2x32xf32>
    %13 = arith.maximumf %11, %12 : vector<2x32xf32>
    %c0_10 = arith.constant 0 : index
    %c0_11 = arith.constant 0 : index
    %c0_12 = arith.constant 0 : index
    %14 = vector.load %arg5[%c0_10, %c0_11, %c0_12] : memref<4x32x32xf32, #tpu.memory_space<vmem>>, vector<1x32x32xf32>
    %15 = vector.shape_cast %14 : vector<1x32x32xf32> to vector<32x32xf32>
    %cst_13 = arith.constant dense<0.000000e+00> : vector<2x32xf32>
    %16 = tpu.matmul %13, %15, %cst_13 {dimension_numbers = #tpu.dot_dimension_numbers<[1], [0], [0], [1], [0, 0, 1, 1], [], []>} : vector<2x32xf32>, vector<32x32xf32>, vector<2x32xf32> -> vector<2x32xf32>
    %c0_14 = arith.constant 0 : index
    %c0_15 = arith.constant 0 : index
    %17 = vector.load %arg6[%c0_14, %c0_15] : memref<4x32xf32, #tpu.memory_space<vmem>>, vector<1x32xf32>
    %18 = vector.broadcast %17 : vector<1x32xf32> to vector<2x32xf32>
    %19 = arith.addf %16, %18 : vector<2x32xf32>
    %c0_16 = arith.constant 0 : index
    %c0_17 = arith.constant 0 : index
    %20 = vector.load %arg7[%c0_16, %c0_17] : memref<4x32xf32, #tpu.memory_space<vmem>>, vector<1x32xf32>
    %21 = vector.broadcast %20 : vector<1x32xf32> to vector<2x32xf32>
    %22 = arith.mulf %19, %21 : vector<2x32xf32>
    %c0_18 = arith.constant 0 : index
    %c0_19 = arith.constant 0 : index
    %23 = vector.load %arg8[%c0_18, %c0_19] : memref<4x32xf32, #tpu.memory_space<vmem>>, vector<1x32xf32>
    %24 = vector.broadcast %23 : vector<1x32xf32> to vector<2x32xf32>
    %25 = arith.addf %22, %24 : vector<2x32xf32>
    %cst_20 = arith.constant 0.000000e+00 : f32
    %26 = vector.broadcast %cst_20 : f32 to vector<2x32xf32>
    %27 = arith.maximumf %25, %26 : vector<2x32xf32>
    %c1 = arith.constant 1 : index
    %c0_21 = arith.constant 0 : index
    %c0_22 = arith.constant 0 : index
    %28 = vector.load %arg5[%c1, %c0_21, %c0_22] : memref<4x32x32xf32, #tpu.memory_space<vmem>>, vector<1x32x32xf32>
    %29 = vector.shape_cast %28 : vector<1x32x32xf32> to vector<32x32xf32>
    %cst_23 = arith.constant dense<0.000000e+00> : vector<2x32xf32>
    %30 = tpu.matmul %27, %29, %cst_23 {dimension_numbers = #tpu.dot_dimension_numbers<[1], [0], [0], [1], [0, 0, 1, 1], [], []>} : vector<2x32xf32>, vector<32x32xf32>, vector<2x32xf32> -> vector<2x32xf32>
    %c1_24 = arith.constant 1 : index
    %c0_25 = arith.constant 0 : index
    %31 = vector.load %arg6[%c1_24, %c0_25] : memref<4x32xf32, #tpu.memory_space<vmem>>, vector<1x32xf32>
    %32 = vector.broadcast %31 : vector<1x32xf32> to vector<2x32xf32>
    %33 = arith.addf %30, %32 : vector<2x32xf32>
    %c1_26 = arith.constant 1 : index
    %c0_27 = arith.constant 0 : index
    %34 = vector.load %arg7[%c1_26, %c0_27] : memref<4x32xf32, #tpu.memory_space<vmem>>, vector<1x32xf32>
    %35 = vector.broadcast %34 : vector<1x32xf32> to vector<2x32xf32>
    %36 = arith.mulf %33, %35 : vector<2x32xf32>
    %c1_28 = arith.constant 1 : index
    %c0_29 = arith.constant 0 : index
    %37 = vector.load %arg8[%c1_28, %c0_29] : memref<4x32xf32, #tpu.memory_space<vmem>>, vector<1x32xf32>
    %38 = vector.broadcast %37 : vector<1x32xf32> to vector<2x32xf32>
    %39 = arith.addf %36, %38 : vector<2x32xf32>
    %cst_30 = arith.constant 0.000000e+00 : f32
    %40 = vector.broadcast %cst_30 : f32 to vector<2x32xf32>
    %41 = arith.maximumf %39, %40 : vector<2x32xf32>
    %42 = arith.addf %13, %41 : vector<2x32xf32>
    %c2 = arith.constant 2 : index
    %c0_31 = arith.constant 0 : index
    %c0_32 = arith.constant 0 : index
    %43 = vector.load %arg5[%c2, %c0_31, %c0_32] : memref<4x32x32xf32, #tpu.memory_space<vmem>>, vector<1x32x32xf32>
    %44 = vector.shape_cast %43 : vector<1x32x32xf32> to vector<32x32xf32>
    %cst_33 = arith.constant dense<0.000000e+00> : vector<2x32xf32>
    %45 = tpu.matmul %42, %44, %cst_33 {dimension_numbers = #tpu.dot_dimension_numbers<[1], [0], [0], [1], [0, 0, 1, 1], [], []>} : vector<2x32xf32>, vector<32x32xf32>, vector<2x32xf32> -> vector<2x32xf32>
    %c2_34 = arith.constant 2 : index
    %c0_35 = arith.constant 0 : index
    %46 = vector.load %arg6[%c2_34, %c0_35] : memref<4x32xf32, #tpu.memory_space<vmem>>, vector<1x32xf32>
    %47 = vector.broadcast %46 : vector<1x32xf32> to vector<2x32xf32>
    %48 = arith.addf %45, %47 : vector<2x32xf32>
    %c2_36 = arith.constant 2 : index
    %c0_37 = arith.constant 0 : index
    %49 = vector.load %arg7[%c2_36, %c0_37] : memref<4x32xf32, #tpu.memory_space<vmem>>, vector<1x32xf32>
    %50 = vector.broadcast %49 : vector<1x32xf32> to vector<2x32xf32>
    %51 = arith.mulf %48, %50 : vector<2x32xf32>
    %c2_38 = arith.constant 2 : index
    %c0_39 = arith.constant 0 : index
    %52 = vector.load %arg8[%c2_38, %c0_39] : memref<4x32xf32, #tpu.memory_space<vmem>>, vector<1x32xf32>
    %53 = vector.broadcast %52 : vector<1x32xf32> to vector<2x32xf32>
    %54 = arith.addf %51, %53 : vector<2x32xf32>
    %cst_40 = arith.constant 0.000000e+00 : f32
    %55 = vector.broadcast %cst_40 : f32 to vector<2x32xf32>
    %56 = arith.maximumf %54, %55 : vector<2x32xf32>
    %c3 = arith.constant 3 : index
    %c0_41 = arith.constant 0 : index
    %c0_42 = arith.constant 0 : index
    %57 = vector.load %arg5[%c3, %c0_41, %c0_42] : memref<4x32x32xf32, #tpu.memory_space<vmem>>, vector<1x32x32xf32>
    %58 = vector.shape_cast %57 : vector<1x32x32xf32> to vector<32x32xf32>
    %cst_43 = arith.constant dense<0.000000e+00> : vector<2x32xf32>
    %59 = tpu.matmul %56, %58, %cst_43 {dimension_numbers = #tpu.dot_dimension_numbers<[1], [0], [0], [1], [0, 0, 1, 1], [], []>} : vector<2x32xf32>, vector<32x32xf32>, vector<2x32xf32> -> vector<2x32xf32>
    %c3_44 = arith.constant 3 : index
    %c0_45 = arith.constant 0 : index
    %60 = vector.load %arg6[%c3_44, %c0_45] : memref<4x32xf32, #tpu.memory_space<vmem>>, vector<1x32xf32>
    %61 = vector.broadcast %60 : vector<1x32xf32> to vector<2x32xf32>
    %62 = arith.addf %59, %61 : vector<2x32xf32>
    %c3_46 = arith.constant 3 : index
    %c0_47 = arith.constant 0 : index
    %63 = vector.load %arg7[%c3_46, %c0_47] : memref<4x32xf32, #tpu.memory_space<vmem>>, vector<1x32xf32>
    %64 = vector.broadcast %63 : vector<1x32xf32> to vector<2x32xf32>
    %65 = arith.mulf %62, %64 : vector<2x32xf32>
    %c3_48 = arith.constant 3 : index
    %c0_49 = arith.constant 0 : index
    %66 = vector.load %arg8[%c3_48, %c0_49] : memref<4x32xf32, #tpu.memory_space<vmem>>, vector<1x32xf32>
    %67 = vector.broadcast %66 : vector<1x32xf32> to vector<2x32xf32>
    %68 = arith.addf %65, %67 : vector<2x32xf32>
    %cst_50 = arith.constant 0.000000e+00 : f32
    %69 = vector.broadcast %cst_50 : f32 to vector<2x32xf32>
    %70 = arith.maximumf %68, %69 : vector<2x32xf32>
    %71 = arith.addf %42, %70 : vector<2x32xf32>
    %c0_51 = arith.constant 0 : index
    %c0_52 = arith.constant 0 : index
    %72 = vector.load %arg9[%c0_51, %c0_52] : memref<32x6xf32, #tpu.memory_space<vmem>>, vector<32x6xf32>
    %cst_53 = arith.constant dense<0.000000e+00> : vector<2x6xf32>
    %73 = tpu.matmul %71, %72, %cst_53 {dimension_numbers = #tpu.dot_dimension_numbers<[1], [0], [0], [1], [0, 0, 1, 1], [], []>} : vector<2x32xf32>, vector<32x6xf32>, vector<2x6xf32> -> vector<2x6xf32>
    %c0_54 = arith.constant 0 : index
    %c0_55 = arith.constant 0 : index
    %74 = vector.load %arg10[%c0_54, %c0_55] : memref<1x6xf32, #tpu.memory_space<vmem>>, vector<1x6xf32>
    %75 = vector.broadcast %74 : vector<1x6xf32> to vector<2x6xf32>
    %76 = arith.addf %73, %75 : vector<2x6xf32>
    %c0_56 = arith.constant 0 : index
    %c0_57 = arith.constant 0 : index
    %77 = vector.load %arg11[%c0_56, %c0_57] : memref<2x6xf32, #tpu.memory_space<vmem>>, vector<2x6xf32>
    tpu.vector_store %arg11[%c0_56, %c0_57], %76 {strides = array<i32>} : memref<2x6xf32, #tpu.memory_space<vmem>>, vector<2x6xf32>,
    return
  }
}

</mosaic_0001>

<llo_original>
// kernel: tpu_custom_call.1
$region0: #{tpu_custom_call.1}
  #allocation0 [shape = 'u32[]', space=smem, size = 0x4, offset = 0x4, fixed_abs, tag = 'smem constant byte address 0x4 - core index']
  #allocation1 [shape = 'u32[144,128]{1,0:T(1,128)}', space=vmem, size = 0x12000, scoped, tag = 'internal scratch']
  %s0 = inlined_call_operand.vmem [shape: f32[2,16], index: 0, kind: input, shape index: {}]
  %s1 = inlined_call_operand.vmem [shape: f32[16,32], index: 1, kind: input, shape index: {}]
  %s2 = inlined_call_operand.vmem [shape: f32[1,32], index: 2, kind: input, shape index: {}]
  %s3 = inlined_call_operand.vmem [shape: f32[1,32], index: 3, kind: input, shape index: {}]
  %s4 = inlined_call_operand.vmem [shape: f32[1,32], index: 4, kind: input, shape index: {}]
  %s5 = inlined_call_operand.hbm [shape: f32[4,32,32], index: 5, kind: input, shape index: {}]
  %s6 = inlined_call_operand.vmem [shape: f32[4,32], index: 6, kind: input, shape index: {}]
  %s7 = inlined_call_operand.vmem [shape: f32[4,32], index: 7, kind: input, shape index: {}]
  %s8 = inlined_call_operand.vmem [shape: f32[4,32], index: 8, kind: input, shape index: {}]
  %s9 = inlined_call_operand.vmem [shape: f32[32,6], index: 9, kind: input, shape index: {}]
  %s10 = inlined_call_operand.vmem [shape: f32[1,6], index: 10, kind: input, shape index: {}]
  %s11 = inlined_call_operand.hbm [shape: f32[2,6], index: 11, kind: output, shape index: {}]
  %s12 = sld [smem:[#allocation0]]
  $region58: #{tpu_custom_call.1} parent=0
    _
  %s14 = ssub.s32 1, %s12
  %s15 = scalar_select 0, %s14, %s12
  $region1: #{tpu_custom_call.1} parent=0
    #allocation2 [shape = 'u8[65536]{0}', space=vmem, size = 0x10000, scoped, tag = 'input window, operand 5, single buffered']
    #allocation3 [shape = 's32[1]{0}', space=sflag, size = 0x4, scoped, tag = 'scoped memory for tpu_custom_call.1']
    #allocation4 [shape = 's32[1]{0}', space=sflag, size = 0x4, scoped, tag = 'scoped memory for tpu_custom_call.1']
    #allocation5 [shape = 'u8[1024]{0}', space=vmem, size = 0x400, scoped, tag = 'output window, operand 0, single buffered']
    %16 = vsyncpa [#allocation3], 0
    %17 = vsyncpa [#allocation4], 0
    // Predicated region
    $region2: #{tpu_custom_call.1} parent=1 // pred_check
      _
    $region3: #{tpu_custom_call.1} parent=1 // pred_check_branch
      %19 = sbr.rel (0) target = $region5
    $region4: #{tpu_custom_call.1} parent=1 // pred_region
      _
    $region5: #{tpu_custom_call.1} parent=1 // pred_fallthru
      _
    // Predicated region
    $region6: #{tpu_custom_call.1} parent=1 // pred_check
      _
    $region7: #{tpu_custom_call.1} parent=1 // pred_check_branch
      %21 = sbr.rel (0) target = $region9
    $region8: #{tpu_custom_call.1} parent=1 // pred_region
      _
    $region9: #{tpu_custom_call.1} parent=1 // pred_fallthru
      _
    // Predicated region
    $region10: #{tpu_custom_call.1} parent=1 // pred_check
      _
    $region11: #{tpu_custom_call.1} parent=1 // pred_check_branch
      %23 = sbr.rel (0) target = $region13
    $region12: #{tpu_custom_call.1} parent=1 // pred_region
      _
    $region13: #{tpu_custom_call.1} parent=1 // pred_fallthru
      _
    // Predicated region
    $region14: #{tpu_custom_call.1} parent=1 // pred_check
      _
    $region15: #{tpu_custom_call.1} parent=1 // pred_check_branch
      %25 = sbr.rel (0) target = $region17
    $region16: #{tpu_custom_call.1} parent=1 // pred_region
      _
    $region17: #{tpu_custom_call.1} parent=1 // pred_fallthru
      _
    // Predicated region
    $region18: #{tpu_custom_call.1} parent=1 // pred_check
      _
    $region19: #{tpu_custom_call.1} parent=1 // pred_check_branch
      %27 = sbr.rel (0) target = $region21
    $region20: #{tpu_custom_call.1} parent=1 // pred_region
      _
    $region21: #{tpu_custom_call.1} parent=1 // pred_fallthru
      _
    // Predicated region
    $region22: #{tpu_custom_call.1} parent=1 // pred_check
      _
    $region23: #{tpu_custom_call.1} parent=1 // pred_check_branch
      %29 = sbr.rel (0) target = $region25
    $region24: #{tpu_custom_call.1} parent=1 // pred_region
      %s31 = ssub.s32 2048, 2048
      %32 = vsyncadd [#allocation3], %s31
      %s33 = sshll.u32 [#allocation2], 4
      %s34 = int_to_ptr.vmem [resolvable:$true] %s33
      %39 = dma.hbm_to_vmem [thread:$0]  %s5, 2048, %s34, [#allocation3], 128, 128, 8
    $region25: #{tpu_custom_call.1} parent=1 // pred_fallthru
      _
    // Predicated region
    $region26: #{tpu_custom_call.1} parent=1 // pred_check
      _
    $region27: #{tpu_custom_call.1} parent=1 // pred_check_branch
      %41 = sbr.rel (0) target = $region29
    $region28: #{tpu_custom_call.1} parent=1 // pred_region
      _
    $region29: #{tpu_custom_call.1} parent=1 // pred_fallthru
      _
    // Predicated region
    $region30: #{tpu_custom_call.1} parent=1 // pred_check
      _
    $region31: #{tpu_custom_call.1} parent=1 // pred_check_branch
      %43 = sbr.rel (0) target = $region33
    $region32: #{tpu_custom_call.1} parent=1 // pred_region
      _
    $region33: #{tpu_custom_call.1} parent=1 // pred_fallthru
      _
    // Predicated region
    $region34: #{tpu_custom_call.1} parent=1 // pred_check
      _
    $region35: #{tpu_custom_call.1} parent=1 // pred_check_branch
      %45 = sbr.rel (0) target = $region37
    $region36: #{tpu_custom_call.1} parent=1 // pred_region
      _
    $region37: #{tpu_custom_call.1} parent=1 // pred_fallthru
      _
    // Predicated region
    $region38: #{tpu_custom_call.1} parent=1 // pred_check
      _
    $region39: #{tpu_custom_call.1} parent=1 // pred_check_branch
      %47 = sbr.rel (0) target = $region41
    $region40: #{tpu_custom_call.1} parent=1 // pred_region
      _
    $region41: #{tpu_custom_call.1} parent=1 // pred_fallthru
      _
    // Predicated region
    $region42: #{tpu_custom_call.1} parent=1 // pred_check
      _
    $region43: #{tpu_custom_call.1} parent=1 // pred_check_branch
      %49 = sbr.rel (0) target = $region45
    $region44: #{tpu_custom_call.1} parent=1 // pred_region
      _
    $region45: #{tpu_custom_call.1} parent=1 // pred_fallthru
      _
    // Predicated region
    $region46: #{tpu_custom_call.1} parent=1 // pred_check
      _
    $region47: #{tpu_custom_call.1} parent=1 // pred_check_branch
      %51 = sbr.rel (0) target = $region49
    $region48: #{tpu_custom_call.1} parent=1 // pred_region
      %52 = dma.done [#allocation3], 2048
    $region49: #{tpu_custom_call.1} parent=1 // pred_fallthru
      _
    %v53 = vld [vmem:[%s0] sm:$0x3]
    %v54 = vld [vmem:[%s1] sm:$0xff]
    %v55 = vld [vmem:[%s1 + $0x8] sm:$0xff]
    %v56 = vld [vmem:[%s2] sm:$0x1]
    %v58 = vlaneseq
    %v59 = vshrl.u32 %v58, 7
    %v60 = vsub.s32 0, %v59
    %v61 = vrot.slane %v56, %v60
    %vm63 = vcmask 130048
    %v65 = vsel %vm63, %v53, 0
    %67 = vmatprep.subr.mxu0 0.0
    %68 = vmatpush1.msra.mxu0 %v54
    %69 = vmatprep.subr.mxu0 0.0
    %70 = vmatpush1.msra.mxu0 %v55
    %71 = vmatprep.subr.mxu0 0.0
    %72 = vmatpush1.msra.mxu0 0.0
    %73 = vmatprep.subr.mxu0 0.0
    %74 = vmatpush1.msra.mxu0 0.0
    %75 = vmatprep.subr.mxu0 0.0
    %76 = vmatpush1.msra.mxu0 0.0
    %77 = vmatprep.subr.mxu0 0.0
    %78 = vmatpush1.msra.mxu0 0.0
    %79 = vmatprep.subr.mxu0 0.0
    %80 = vmatpush1.msra.mxu0 0.0
    %81 = vmatprep.subr.mxu0 0.0
    %82 = vmatpush1.msra.mxu0 0.0
    %83 = vmatprep.subr.mxu0 0.0
    %84 = vmatpush1.msra.mxu0 0.0
    %85 = vmatprep.subr.mxu0 0.0
    %86 = vmatpush1.msra.mxu0 0.0
    %87 = vmatprep.subr.mxu0 0.0
    %88 = vmatpush1.msra.mxu0 0.0
    %89 = vmatprep.subr.mxu0 0.0
    %90 = vmatpush1.msra.mxu0 0.0
    %91 = vmatprep.subr.mxu0 0.0
    %92 = vmatpush1.msra.mxu0 0.0
    %93 = vmatprep.subr.mxu0 0.0
    %94 = vmatpush1.msra.mxu0 0.0
    %95 = vmatprep.subr.mxu0 0.0
    %96 = vmatpush1.msra.mxu0 0.0
    %97 = vmatprep.subr.mxu0 0.0
    %98 = vmatpush1.msra.mxu0 0.0
    %99 = vmatprep.subr.mxu0 0.0
    %100 = vmatpush1.msra.mxu0 0.0
    %101 = vmatprep.subr.mxu0 0.0
    %102 = vmatpush1.msra.mxu0 0.0
    %103 = vmatprep.subr.mxu0 0.0
    %104 = vmatpush1.msra.mxu0 0.0
    %105 = vmatprep.subr.mxu0 0.0
    %106 = vmatpush1.msra.mxu0 0.0
    %107 = vmatprep.subr.mxu0 0.0
    %108 = vmatpush1.msra.mxu0 0.0
    %109 = vmatprep.subr.mxu0 0.0
    %110 = vmatpush1.msra.mxu0 0.0
    %111 = vmatprep.subr.mxu0 0.0
    %112 = vmatpush1.msra.mxu0 0.0
    %113 = vmatprep.subr.mxu0 0.0
    %114 = vmatpush1.msra.mxu0 0.0
    %115 = vmatprep.subr.mxu0 0.0
    %116 = vmatpush1.msra.mxu0 0.0
    %117 = vmatprep.subr.mxu0 0.0
    %118 = vmatpush1.msra.mxu0 0.0
    %119 = vmatprep.subr.mxu0 0.0
    %120 = vmatpush1.msra.mxu0 0.0
    %121 = vmatprep.subr.mxu0 0.0
    %122 = vmatpush1.msra.mxu0 0.0
    %123 = vmatprep.subr.mxu0 0.0
    %124 = vmatpush1.msra.mxu0 0.0
    %125 = vmatprep.subr.mxu0 0.0
    %126 = vmatpush1.msra.mxu0 0.0
    %127 = vmatprep.subr.mxu0 0.0
    %128 = vmatpush1.msra.mxu0 0.0
    %129 = vmatprep.subr.mxu0 0.0
    %130 = vmatpush1.msra.mxu0 0.0
    %131 = vmatprep.mubr.f32.mxu0 0.0
    %132 = vmatmul.mubr.f32.gmra.mrb[0].mxu0 %v65
    %v133 = vpop.f32.mrb[0].mxu0
    %v134 = vadd.f32 %v61, %v133
    %v135 = vpop.f32.mrb[0].mxu0
    %136 = vdwg.mxu0
    %v137 = vld [vmem:[%s3] sm:$0x1]
    %v139 = vlaneseq
    %v140 = vshrl.u32 %v139, 7
    %v141 = vsub.s32 0, %v140
    %v142 = vrot.slane %v137, %v141
    %v144 = vmul.f32 %v134, %v142
    %v145 = vld [vmem:[%s4] sm:$0x1]
    %v147 = vlaneseq
    %v148 = vshrl.u32 %v147, 7
    %v149 = vsub.s32 0, %v148
    %v150 = vrot.slane %v145, %v149
    %v152 = vadd.f32 %v144, %v150
    %v153 = vmax.f32 %v152, 0.0
    %v154 = vld [vmem:[#allocation2] sm:$0xff]
    %v155 = vld [vmem:[#allocation2 + $0x8] sm:$0xff]
    %v156 = vld [vmem:[#allocation2 + $0x10] sm:$0xff]
    %v157 = vld [vmem:[#allocation2 + $0x18] sm:$0xff]
    %v158 = vld [vmem:[%s6] sm:$0x1]
    %v159 = vlaneseq
    %v160 = vshrl.u32 %v159, 7
    %v161 = vsub.s32 0, %v160
    %v162 = vrot.slane %v158, %v161
    %vm163 = vcmask 261120
    %v165 = vsel %vm163, %v153, 0
    %167 = vmatprep.subr.mxu0 0.0
    %168 = vmatpush1.msra.mxu0 %v154
    %169 = vmatprep.subr.mxu0 0.0
    %170 = vmatpush1.msra.mxu0 %v155
    %171 = vmatprep.subr.mxu0 0.0
    %172 = vmatpush1.msra.mxu0 %v156
    %173 = vmatprep.subr.mxu0 0.0
    %174 = vmatpush1.msra.mxu0 %v157
    %175 = vmatprep.subr.mxu0 0.0
    %176 = vmatpush1.msra.mxu0 0.0
    %177 = vmatprep.subr.mxu0 0.0
    %178 = vmatpush1.msra.mxu0 0.0
    %179 = vmatprep.subr.mxu0 0.0
    %180 = vmatpush1.msra.mxu0 0.0
    %181 = vmatprep.subr.mxu0 0.0
    %182 = vmatpush1.msra.mxu0 0.0
    %183 = vmatprep.subr.mxu0 0.0
    %184 = vmatpush1.msra.mxu0 0.0
    %185 = vmatprep.subr.mxu0 0.0
    %186 = vmatpush1.msra.mxu0 0.0
    %187 = vmatprep.subr.mxu0 0.0
    %188 = vmatpush1.msra.mxu0 0.0
    %189 = vmatprep.subr.mxu0 0.0
    %190 = vmatpush1.msra.mxu0 0.0
    %191 = vmatprep.subr.mxu0 0.0
    %192 = vmatpush1.msra.mxu0 0.0
    %193 = vmatprep.subr.mxu0 0.0
    %194 = vmatpush1.msra.mxu0 0.0
    %195 = vmatprep.subr.mxu0 0.0
    %196 = vmatpush1.msra.mxu0 0.0
    %197 = vmatprep.subr.mxu0 0.0
    %198 = vmatpush1.msra.mxu0 0.0
    %199 = vmatprep.subr.mxu0 0.0
    %200 = vmatpush1.msra.mxu0 0.0
    %201 = vmatprep.subr.mxu0 0.0
    %202 = vmatpush1.msra.mxu0 0.0
    %203 = vmatprep.subr.mxu0 0.0
    %204 = vmatpush1.msra.mxu0 0.0
    %205 = vmatprep.subr.mxu0 0.0
    %206 = vmatpush1.msra.mxu0 0.0
    %207 = vmatprep.subr.mxu0 0.0
    %208 = vmatpush1.msra.mxu0 0.0
    %209 = vmatprep.subr.mxu0 0.0
    %210 = vmatpush1.msra.mxu0 0.0
    %211 = vmatprep.subr.mxu0 0.0
    %212 = vmatpush1.msra.mxu0 0.0
    %213 = vmatprep.subr.mxu0 0.0
    %214 = vmatpush1.msra.mxu0 0.0
    %215 = vmatprep.subr.mxu0 0.0
    %216 = vmatpush1.msra.mxu0 0.0
    %217 = vmatprep.subr.mxu0 0.0
    %218 = vmatpush1.msra.mxu0 0.0
    %219 = vmatprep.subr.mxu0 0.0
    %220 = vmatpush1.msra.mxu0 0.0
    %221 = vmatprep.subr.mxu0 0.0
    %222 = vmatpush1.msra.mxu0 0.0
    %223 = vmatprep.subr.mxu0 0.0
    %224 = vmatpush1.msra.mxu0 0.0
    %225 = vmatprep.subr.mxu0 0.0
    %226 = vmatpush1.msra.mxu0 0.0
    %227 = vmatprep.subr.mxu0 0.0
    %228 = vmatpush1.msra.mxu0 0.0
    %229 = vmatprep.subr.mxu0 0.0
    %230 = vmatpush1.msra.mxu0 0.0
    %231 = vmatprep.mubr.f32.mxu0 0.0
    %232 = vmatmul.mubr.f32.gmra.mrb[0].mxu0 %v165
    %v233 = vpop.f32.mrb[0].mxu0
    %v234 = vadd.f32 %v162, %v233
    %v235 = vpop.f32.mrb[0].mxu0
    %236 = vdwg.mxu0
    %v237 = vld [vmem:[%s7] sm:$0x1]
    %v238 = vlaneseq
    %v239 = vshrl.u32 %v238, 7
    %v240 = vsub.s32 0, %v239
    %v241 = vrot.slane %v237, %v240
    %v242 = vmul.f32 %v234, %v241
    %v243 = vld [vmem:[%s8] sm:$0x1]
    %v244 = vlaneseq
    %v245 = vshrl.u32 %v244, 7
    %v246 = vsub.s32 0, %v245
    %v247 = vrot.slane %v243, %v246
    %v248 = vadd.f32 %v242, %v247
    %v249 = vmax.f32 %v248, 0.0
    %s250 = scalar_lea.vmem [#allocation2], 32
    %v251 = vld [vmem:[%s250] sm:$0xff]
    %v252 = vld [vmem:[%s250 + $0x8] sm:$0xff]
    %v253 = vld [vmem:[%s250 + $0x10] sm:$0xff]
    %v254 = vld [vmem:[%s250 + $0x18] sm:$0xff]
    %v255 = vld [vmem:[%s6 + $0x1] sm:$0x1]
    %v256 = vlaneseq
    %v257 = vshrl.u32 %v256, 7
    %v258 = vsub.s32 0, %v257
    %v259 = vrot.slane %v255, %v258
    %v261 = vsel %vm163, %v249, 0
    %263 = vmatprep.subr.mxu0 0.0
    %264 = vmatpush1.msra.mxu0 %v251
    %265 = vmatprep.subr.mxu0 0.0
    %266 = vmatpush1.msra.mxu0 %v252
    %267 = vmatprep.subr.mxu0 0.0
    %268 = vmatpush1.msra.mxu0 %v253
    %269 = vmatprep.subr.mxu0 0.0
    %270 = vmatpush1.msra.mxu0 %v254
    %271 = vmatprep.subr.mxu0 0.0
    %272 = vmatpush1.msra.mxu0 0.0
    %273 = vmatprep.subr.mxu0 0.0
    %274 = vmatpush1.msra.mxu0 0.0
    %275 = vmatprep.subr.mxu0 0.0
    %276 = vmatpush1.msra.mxu0 0.0
    %277 = vmatprep.subr.mxu0 0.0
    %278 = vmatpush1.msra.mxu0 0.0
    %279 = vmatprep.subr.mxu0 0.0
    %280 = vmatpush1.msra.mxu0 0.0
    %281 = vmatprep.subr.mxu0 0.0
    %282 = vmatpush1.msra.mxu0 0.0
    %283 = vmatprep.subr.mxu0 0.0
    %284 = vmatpush1.msra.mxu0 0.0
    %285 = vmatprep.subr.mxu0 0.0
    %286 = vmatpush1.msra.mxu0 0.0
    %287 = vmatprep.subr.mxu0 0.0
    %288 = vmatpush1.msra.mxu0 0.0
    %289 = vmatprep.subr.mxu0 0.0
    %290 = vmatpush1.msra.mxu0 0.0
    %291 = vmatprep.subr.mxu0 0.0
    %292 = vmatpush1.msra.mxu0 0.0
    %293 = vmatprep.subr.mxu0 0.0
    %294 = vmatpush1.msra.mxu0 0.0
    %295 = vmatprep.subr.mxu0 0.0
    %296 = vmatpush1.msra.mxu0 0.0
    %297 = vmatprep.subr.mxu0 0.0
    %298 = vmatpush1.msra.mxu0 0.0
    %299 = vmatprep.subr.mxu0 0.0
    %300 = vmatpush1.msra.mxu0 0.0
    %301 = vmatprep.subr.mxu0 0.0
    %302 = vmatpush1.msra.mxu0 0.0
    %303 = vmatprep.subr.mxu0 0.0
    %304 = vmatpush1.msra.mxu0 0.0
    %305 = vmatprep.subr.mxu0 0.0
    %306 = vmatpush1.msra.mxu0 0.0
    %307 = vmatprep.subr.mxu0 0.0
    %308 = vmatpush1.msra.mxu0 0.0
    %309 = vmatprep.subr.mxu0 0.0
    %310 = vmatpush1.msra.mxu0 0.0
    %311 = vmatprep.subr.mxu0 0.0
    %312 = vmatpush1.msra.mxu0 0.0
    %313 = vmatprep.subr.mxu0 0.0
    %314 = vmatpush1.msra.mxu0 0.0
    %315 = vmatprep.subr.mxu0 0.0
    %316 = vmatpush1.msra.mxu0 0.0
    %317 = vmatprep.subr.mxu0 0.0
    %318 = vmatpush1.msra.mxu0 0.0
    %319 = vmatprep.subr.mxu0 0.0
    %320 = vmatpush1.msra.mxu0 0.0
    %321 = vmatprep.subr.mxu0 0.0
    %322 = vmatpush1.msra.mxu0 0.0
    %323 = vmatprep.subr.mxu0 0.0
    %324 = vmatpush1.msra.mxu0 0.0
    %325 = vmatprep.subr.mxu0 0.0
    %326 = vmatpush1.msra.mxu0 0.0
    %327 = vmatprep.mubr.f32.mxu0 0.0
    %328 = vmatmul.mubr.f32.gmra.mrb[0].mxu0 %v261
    %v329 = vpop.f32.mrb[0].mxu0
    %v330 = vadd.f32 %v259, %v329
    %v331 = vpop.f32.mrb[0].mxu0
    %332 = vdwg.mxu0
    %v333 = vld [vmem:[%s7 + $0x1] sm:$0x1]
    %v334 = vlaneseq
    %v335 = vshrl.u32 %v334, 7
    %v336 = vsub.s32 0, %v335
    %v337 = vrot.slane %v333, %v336
    %v338 = vmul.f32 %v330, %v337
    %v339 = vld [vmem:[%s8 + $0x1] sm:$0x1]
    %v340 = vlaneseq
    %v341 = vshrl.u32 %v340, 7
    %v342 = vsub.s32 0, %v341
    %v343 = vrot.slane %v339, %v342
    %v344 = vadd.f32 %v338, %v343
    %v345 = vmax.f32 %v344, 0.0
    %v346 = vadd.f32 %v153, %v345
    %s347 = scalar_lea.vmem [#allocation2], 64
    %v348 = vld [vmem:[%s347] sm:$0xff]
    %v349 = vld [vmem:[%s347 + $0x8] sm:$0xff]
    %v350 = vld [vmem:[%s347 + $0x10] sm:$0xff]
    %v351 = vld [vmem:[%s347 + $0x18] sm:$0xff]
    %v352 = vld [vmem:[%s6 + $0x2] sm:$0x1]
    %v353 = vlaneseq
    %v354 = vshrl.u32 %v353, 7
    %v355 = vsub.s32 0, %v354
    %v356 = vrot.slane %v352, %v355
    %v358 = vsel %vm163, %v346, 0
    %360 = vmatprep.subr.mxu0 0.0
    %361 = vmatpush1.msra.mxu0 %v348
    %362 = vmatprep.subr.mxu0 0.0
    %363 = vmatpush1.msra.mxu0 %v349
    %364 = vmatprep.subr.mxu0 0.0
    %365 = vmatpush1.msra.mxu0 %v350
    %366 = vmatprep.subr.mxu0 0.0
    %367 = vmatpush1.msra.mxu0 %v351
    %368 = vmatprep.subr.mxu0 0.0
    %369 = vmatpush1.msra.mxu0 0.0
    %370 = vmatprep.subr.mxu0 0.0
    %371 = vmatpush1.msra.mxu0 0.0
    %372 = vmatprep.subr.mxu0 0.0
    %373 = vmatpush1.msra.mxu0 0.0
    %374 = vmatprep.subr.mxu0 0.0
    %375 = vmatpush1.msra.mxu0 0.0
    %376 = vmatprep.subr.mxu0 0.0
    %377 = vmatpush1.msra.mxu0 0.0
    %378 = vmatprep.subr.mxu0 0.0
    %379 = vmatpush1.msra.mxu0 0.0
    %380 = vmatprep.subr.mxu0 0.0
    %381 = vmatpush1.msra.mxu0 0.0
    %382 = vmatprep.subr.mxu0 0.0
    %383 = vmatpush1.msra.mxu0 0.0
    %384 = vmatprep.subr.mxu0 0.0
    %385 = vmatpush1.msra.mxu0 0.0
    %386 = vmatprep.subr.mxu0 0.0
    %387 = vmatpush1.msra.mxu0 0.0
    %388 = vmatprep.subr.mxu0 0.0
    %389 = vmatpush1.msra.mxu0 0.0
    %390 = vmatprep.subr.mxu0 0.0
    %391 = vmatpush1.msra.mxu0 0.0
    %392 = vmatprep.subr.mxu0 0.0
    %393 = vmatpush1.msra.mxu0 0.0
    %394 = vmatprep.subr.mxu0 0.0
    %395 = vmatpush1.msra.mxu0 0.0
    %396 = vmatprep.subr.mxu0 0.0
    %397 = vmatpush1.msra.mxu0 0.0
    %398 = vmatprep.subr.mxu0 0.0
    %399 = vmatpush1.msra.mxu0 0.0
    %400 = vmatprep.subr.mxu0 0.0
    %401 = vmatpush1.msra.mxu0 0.0
    %402 = vmatprep.subr.mxu0 0.0
    %403 = vmatpush1.msra.mxu0 0.0
    %404 = vmatprep.subr.mxu0 0.0
    %405 = vmatpush1.msra.mxu0 0.0
    %406 = vmatprep.subr.mxu0 0.0
    %407 = vmatpush1.msra.mxu0 0.0
    %408 = vmatprep.subr.mxu0 0.0
    %409 = vmatpush1.msra.mxu0 0.0
    %410 = vmatprep.subr.mxu0 0.0
    %411 = vmatpush1.msra.mxu0 0.0
    %412 = vmatprep.subr.mxu0 0.0
    %413 = vmatpush1.msra.mxu0 0.0
    %414 = vmatprep.subr.mxu0 0.0
    %415 = vmatpush1.msra.mxu0 0.0
    %416 = vmatprep.subr.mxu0 0.0
    %417 = vmatpush1.msra.mxu0 0.0
    %418 = vmatprep.subr.mxu0 0.0
    %419 = vmatpush1.msra.mxu0 0.0
    %420 = vmatprep.subr.mxu0 0.0
    %421 = vmatpush1.msra.mxu0 0.0
    %422 = vmatprep.subr.mxu0 0.0
    %423 = vmatpush1.msra.mxu0 0.0
    %424 = vmatprep.mubr.f32.mxu0 0.0
    %425 = vmatmul.mubr.f32.gmra.mrb[0].mxu0 %v358
    %v426 = vpop.f32.mrb[0].mxu0
    %v427 = vadd.f32 %v356, %v426
    %v428 = vpop.f32.mrb[0].mxu0
    %429 = vdwg.mxu0
    %v430 = vld [vmem:[%s7 + $0x2] sm:$0x1]
    %v431 = vlaneseq
    %v432 = vshrl.u32 %v431, 7
    %v433 = vsub.s32 0, %v432
    %v434 = vrot.slane %v430, %v433
    %v435 = vmul.f32 %v427, %v434
    %v436 = vld [vmem:[%s8 + $0x2] sm:$0x1]
    %v437 = vlaneseq
    %v438 = vshrl.u32 %v437, 7
    %v439 = vsub.s32 0, %v438
    %v440 = vrot.slane %v436, %v439
    %v441 = vadd.f32 %v435, %v440
    %v442 = vmax.f32 %v441, 0.0
    %s443 = scalar_lea.vmem [#allocation2], 96
    %v444 = vld [vmem:[%s443] sm:$0xff]
    %v445 = vld [vmem:[%s443 + $0x8] sm:$0xff]
    %v446 = vld [vmem:[%s443 + $0x10] sm:$0xff]
    %v447 = vld [vmem:[%s443 + $0x18] sm:$0xff]
    %v448 = vld [vmem:[%s6 + $0x3] sm:$0x1]
    %v449 = vlaneseq
    %v450 = vshrl.u32 %v449, 7
    %v451 = vsub.s32 0, %v450
    %v452 = vrot.slane %v448, %v451
    %v454 = vsel %vm163, %v442, 0
    %456 = vmatprep.subr.mxu0 0.0
    %457 = vmatpush1.msra.mxu0 %v444
    %458 = vmatprep.subr.mxu0 0.0
    %459 = vmatpush1.msra.mxu0 %v445
    %460 = vmatprep.subr.mxu0 0.0
    %461 = vmatpush1.msra.mxu0 %v446
    %462 = vmatprep.subr.mxu0 0.0
    %463 = vmatpush1.msra.mxu0 %v447
    %464 = vmatprep.subr.mxu0 0.0
    %465 = vmatpush1.msra.mxu0 0.0
    %466 = vmatprep.subr.mxu0 0.0
    %467 = vmatpush1.msra.mxu0 0.0
    %468 = vmatprep.subr.mxu0 0.0
    %469 = vmatpush1.msra.mxu0 0.0
    %470 = vmatprep.subr.mxu0 0.0
    %471 = vmatpush1.msra.mxu0 0.0
    %472 = vmatprep.subr.mxu0 0.0
    %473 = vmatpush1.msra.mxu0 0.0
    %474 = vmatprep.subr.mxu0 0.0
    %475 = vmatpush1.msra.mxu0 0.0
    %476 = vmatprep.subr.mxu0 0.0
    %477 = vmatpush1.msra.mxu0 0.0
    %478 = vmatprep.subr.mxu0 0.0
    %479 = vmatpush1.msra.mxu0 0.0
    %480 = vmatprep.subr.mxu0 0.0
    %481 = vmatpush1.msra.mxu0 0.0
    %482 = vmatprep.subr.mxu0 0.0
    %483 = vmatpush1.msra.mxu0 0.0
    %484 = vmatprep.subr.mxu0 0.0
    %485 = vmatpush1.msra.mxu0 0.0
    %486 = vmatprep.subr.mxu0 0.0
    %487 = vmatpush1.msra.mxu0 0.0
    %488 = vmatprep.subr.mxu0 0.0
    %489 = vmatpush1.msra.mxu0 0.0
    %490 = vmatprep.subr.mxu0 0.0
    %491 = vmatpush1.msra.mxu0 0.0
    %492 = vmatprep.subr.mxu0 0.0
    %493 = vmatpush1.msra.mxu0 0.0
    %494 = vmatprep.subr.mxu0 0.0
    %495 = vmatpush1.msra.mxu0 0.0
    %496 = vmatprep.subr.mxu0 0.0
    %497 = vmatpush1.msra.mxu0 0.0
    %498 = vmatprep.subr.mxu0 0.0
    %499 = vmatpush1.msra.mxu0 0.0
    %500 = vmatprep.subr.mxu0 0.0
    %501 = vmatpush1.msra.mxu0 0.0
    %502 = vmatprep.subr.mxu0 0.0
    %503 = vmatpush1.msra.mxu0 0.0
    %504 = vmatprep.subr.mxu0 0.0
    %505 = vmatpush1.msra.mxu0 0.0
    %506 = vmatprep.subr.mxu0 0.0
    %507 = vmatpush1.msra.mxu0 0.0
    %508 = vmatprep.subr.mxu0 0.0
    %509 = vmatpush1.msra.mxu0 0.0
    %510 = vmatprep.subr.mxu0 0.0
    %511 = vmatpush1.msra.mxu0 0.0
    %512 = vmatprep.subr.mxu0 0.0
    %513 = vmatpush1.msra.mxu0 0.0
    %514 = vmatprep.subr.mxu0 0.0
    %515 = vmatpush1.msra.mxu0 0.0
    %516 = vmatprep.subr.mxu0 0.0
    %517 = vmatpush1.msra.mxu0 0.0
    %518 = vmatprep.subr.mxu0 0.0
    %519 = vmatpush1.msra.mxu0 0.0
    %520 = vmatprep.mubr.f32.mxu0 0.0
    %521 = vmatmul.mubr.f32.gmra.mrb[0].mxu0 %v454
    %v522 = vpop.f32.mrb[0].mxu0
    %v523 = vadd.f32 %v452, %v522
    %v524 = vpop.f32.mrb[0].mxu0
    %525 = vdwg.mxu0
    %v526 = vld [vmem:[%s7 + $0x3] sm:$0x1]
    %v527 = vlaneseq
    %v528 = vshrl.u32 %v527, 7
    %v529 = vsub.s32 0, %v528
    %v530 = vrot.slane %v526, %v529
    %v531 = vmul.f32 %v523, %v530
    %v532 = vld [vmem:[%s8 + $0x3] sm:$0x1]
    %v533 = vlaneseq
    %v534 = vshrl.u32 %v533, 7
    %v535 = vsub.s32 0, %v534
    %v536 = vrot.slane %v532, %v535
    %v537 = vadd.f32 %v531, %v536
    %v538 = vmax.f32 %v537, 0.0
    %v539 = vadd.f32 %v346, %v538
    %v540 = vld [vmem:[%s9] sm:$0xff]
    %v541 = vld [vmem:[%s9 + $0x8] sm:$0xff]
    %v542 = vld [vmem:[%s9 + $0x10] sm:$0xff]
    %v543 = vld [vmem:[%s9 + $0x18] sm:$0xff]
    %v544 = vld [vmem:[%s10] sm:$0x1]
    %v546 = vlaneseq
    %v547 = vshrl.u32 %v546, 7
    %v548 = vsub.s32 0, %v547
    %v549 = vrot.slane %v544, %v548
    %v552 = vsel %vm163, %v539, 0
    %554 = vmatprep.subr.mxu0 0.0
    %555 = vmatpush1.msra.mxu0 %v540
    %556 = vmatprep.subr.mxu0 0.0
    %557 = vmatpush1.msra.mxu0 %v541
    %558 = vmatprep.subr.mxu0 0.0
    %559 = vmatpush1.msra.mxu0 %v542
    %560 = vmatprep.subr.mxu0 0.0
    %561 = vmatpush1.msra.mxu0 %v543
    %562 = vmatprep.subr.mxu0 0.0
    %563 = vmatpush1.msra.mxu0 0.0
    %564 = vmatprep.subr.mxu0 0.0
    %565 = vmatpush1.msra.mxu0 0.0
    %566 = vmatprep.subr.mxu0 0.0
    %567 = vmatpush1.msra.mxu0 0.0
    %568 = vmatprep.subr.mxu0 0.0
    %569 = vmatpush1.msra.mxu0 0.0
    %570 = vmatprep.subr.mxu0 0.0
    %571 = vmatpush1.msra.mxu0 0.0
    %572 = vmatprep.subr.mxu0 0.0
    %573 = vmatpush1.msra.mxu0 0.0
    %574 = vmatprep.subr.mxu0 0.0
    %575 = vmatpush1.msra.mxu0 0.0
    %576 = vmatprep.subr.mxu0 0.0
    %577 = vmatpush1.msra.mxu0 0.0
    %578 = vmatprep.subr.mxu0 0.0
    %579 = vmatpush1.msra.mxu0 0.0
    %580 = vmatprep.subr.mxu0 0.0
    %581 = vmatpush1.msra.mxu0 0.0
    %582 = vmatprep.subr.mxu0 0.0
    %583 = vmatpush1.msra.mxu0 0.0
    %584 = vmatprep.subr.mxu0 0.0
    %585 = vmatpush1.msra.mxu0 0.0
    %586 = vmatprep.subr.mxu0 0.0
    %587 = vmatpush1.msra.mxu0 0.0
    %588 = vmatprep.subr.mxu0 0.0
    %589 = vmatpush1.msra.mxu0 0.0
    %590 = vmatprep.subr.mxu0 0.0
    %591 = vmatpush1.msra.mxu0 0.0
    %592 = vmatprep.subr.mxu0 0.0
    %593 = vmatpush1.msra.mxu0 0.0
    %594 = vmatprep.subr.mxu0 0.0
    %595 = vmatpush1.msra.mxu0 0.0
    %596 = vmatprep.subr.mxu0 0.0
    %597 = vmatpush1.msra.mxu0 0.0
    %598 = vmatprep.subr.mxu0 0.0
    %599 = vmatpush1.msra.mxu0 0.0
    %600 = vmatprep.subr.mxu0 0.0
    %601 = vmatpush1.msra.mxu0 0.0
    %602 = vmatprep.subr.mxu0 0.0
    %603 = vmatpush1.msra.mxu0 0.0
    %604 = vmatprep.subr.mxu0 0.0
    %605 = vmatpush1.msra.mxu0 0.0
    %606 = vmatprep.subr.mxu0 0.0
    %607 = vmatpush1.msra.mxu0 0.0
    %608 = vmatprep.subr.mxu0 0.0
    %609 = vmatpush1.msra.mxu0 0.0
    %610 = vmatprep.subr.mxu0 0.0
    %611 = vmatpush1.msra.mxu0 0.0
    %612 = vmatprep.subr.mxu0 0.0
    %613 = vmatpush1.msra.mxu0 0.0
    %614 = vmatprep.subr.mxu0 0.0
    %615 = vmatpush1.msra.mxu0 0.0
    %616 = vmatprep.subr.mxu0 0.0
    %617 = vmatpush1.msra.mxu0 0.0
    %618 = vmatprep.mubr.f32.mxu0 0.0
    %619 = vmatmul.mubr.f32.gmra.mrb[0].mxu0 %v552
    %v620 = vpop.f32.mrb[0].mxu0
    %v621 = vadd.f32 %v549, %v620
    %v622 = vpop.f32.mrb[0].mxu0
    %623 = vdwg.mxu0
    %vm624 = vcmask 41984
    %625 = vst.msk [vmem:[#allocation5] sm:$0x3] %vm624, %v621
    // Predicated region
    $region50: #{tpu_custom_call.1} parent=1 // pred_check
      _
    $region51: #{tpu_custom_call.1} parent=1 // pred_check_branch
      %627 = sbr.rel (0) target = $region53
    $region52: #{tpu_custom_call.1} parent=1 // pred_region
      %s629 = ssub.s32 32, 32
      %630 = vsyncadd [#allocation4], %s629
      %s632 = sshll.u32 [#allocation5], 4
      %s633 = int_to_ptr.vmem [resolvable:$true] %s632
      %635 = dma.vmem_to_hbm [thread:$0]  %s633, 32, %s11, [#allocation4]
    $region53: #{tpu_custom_call.1} parent=1 // pred_fallthru
      _
    // Predicated region
    $region54: #{tpu_custom_call.1} parent=1 // pred_check
      _
    $region55: #{tpu_custom_call.1} parent=1 // pred_check_branch
      %637 = sbr.rel (0) target = $region57
    $region56: #{tpu_custom_call.1} parent=1 // pred_region
      %638 = dma.done [#allocation4], 32
    $region57: #{tpu_custom_call.1} parent=1 // pred_fallthru
      _
    %639 = vsyncpa [#allocation3], 1
    %640 = vsyncpa [#allocation4], 1

</llo_original>
